<compile_context>
chip_gen: v5e
topology: v5e:2x2
jax: 0.10.0
libtpu: 0.0.40
codegen_flags: <defaults>
</compile_context>

<pallas_src>
import functools
import math

import jax
import jax.numpy as jnp
from jax.experimental import pallas as pl
from jax.experimental.pallas import tpu as pltpu


# ----------------------------------------------------------------------------
# Pass 1: per-edge projections, node gather, incidence, out_proj-folded V.
# Runs once per edge (grid over kv tiles) -- no recompute per query tile.
# ----------------------------------------------------------------------------
def _edge_proj_kernel(
    ei_ref,                         # (t, 2)  int32  [src, dst]
    edge_ref,                       # (t, E)  f32
    node_ref,                       # (N, node_dim) f32
    wnq_ref, bnq_ref,               # (node_dim, E) bf16 (scale-folded), (1, E) f32
    wnkv_ref, bnkv_ref,             # (node_dim, 2E) bf16, (1, 2E) f32
    weq_ref, beq_ref,               # (E, E) bf16 (scale-folded), (1, E) f32
    wekv_ref, bekv_ref,             # (E, 2E) bf16, (1, 2E) f32
    wout_ref,                       # (H, hd, E) bf16
    q_ref,                          # out: (t, E)  bf16   (scale already applied)
    k_ref,                          # out: (t, E)  bf16
    vw_ref,                         # out: (H, t, E) bf16 (V @ Wout, per head)
    inc_ref,                        # out: (t, N)  bf16   (edge-node incidence)
    *, n_heads):
  f32 = jnp.float32
  bf16 = jnp.bfloat16
  t, e = edge_ref.shape
  n = node_ref.shape[0]
  hd = e // n_heads

  # one-hot gather / incidence matrices from integer compares (no HBM mask)
  ei = ei_ref[...]
  src, dst = ei[:, 0:1], ei[:, 1:2]                       # (t, 1)
  iota = jax.lax.broadcasted_iota(jnp.int32, (t, n), 1)
  oh_src = (src == iota).astype(bf16)
  oh_dst = (dst == iota).astype(bf16)
  # gather matrix: row i sums node feats of src_i and dst_i (self-loop edges
  # intentionally count the node twice -- matches the PyTorch reference).
  gmat = oh_src + oh_dst                                  # (t, n), exact in bf16
  inc_ref[...] = jnp.maximum(oh_src, oh_dst)              # set-semantics incidence

  node = node_ref[...].astype(bf16)
  edge = edge_ref[...].astype(bf16)

  # node projections (tiny; recomputed per kv tile, cheap relative to M work).
  n_q = jnp.dot(node, wnq_ref[...], preferred_element_type=f32) + bnq_ref[...]
  n_kv = jnp.dot(node, wnkv_ref[...], preferred_element_type=f32) + bnkv_ref[...]

  q = (jnp.dot(edge, weq_ref[...], preferred_element_type=f32) + beq_ref[...]
       + jnp.dot(gmat, n_q.astype(bf16), preferred_element_type=f32))      # (t, E)
  kv = (jnp.dot(edge, wekv_ref[...], preferred_element_type=f32) + bekv_ref[...]
        + jnp.dot(gmat, n_kv.astype(bf16), preferred_element_type=f32))    # (t, 2E)

  q_ref[...] = q.astype(bf16)
  k_ref[...] = kv[:, :e].astype(bf16)

  # fold out_proj into V per head: attention can then emit lane-dense (tq, E)
  # PV results and skip the concatenate + separate out_proj matmul.
  v = kv[:, e:].astype(bf16)                              # (t, E)
  for h in range(n_heads):                                # static loop
    vw_ref[h] = jnp.dot(v[:, h * hd:(h + 1) * hd], wout_ref[h],
                        preferred_element_type=f32).astype(bf16)


# ----------------------------------------------------------------------------
# Pass 2: masked multi-head attention over query-edge tiles.
# ----------------------------------------------------------------------------
def _edge_attn_kernel(
    q_ref,                          # (tq, E)   bf16 (scale folded)
    incq_ref,                       # (tq, N)   bf16
    k_ref,                          # (M, E)    bf16
    vw_ref,                         # (H, M, E) bf16
    incf_ref,                       # (M, N)    bf16
    bout_ref,                       # (1, E)    f32
    o_ref,                          # (tq, E)   f32
    *, n_heads):
  f32 = jnp.float32
  tq, e = q_ref.shape
  hd = e // n_heads

  # share-a-node mask built from the precomputed incidence (exact 0/1 values).
  shared = jax.lax.dot_general(incq_ref[...], incf_ref[...],
                               (((1,), (1,)), ((), ())),
                               preferred_element_type=f32)        # (tq, M)
  unmasked = shared > 0.5
  neg = jnp.float32(-1e30)    # keep masking/softmax in f32 (bf16 would overflow)

  q = q_ref[...]
  k = k_ref[...]
  acc = jnp.zeros((tq, e), f32) + bout_ref[...]           # out_proj bias folded in
  for h in range(n_heads):                                # static loop, all heads
    qh = q[:, h * hd:(h + 1) * hd]
    kh = k[:, h * hd:(h + 1) * hd]
    s = jax.lax.dot_general(qh, kh, (((1,), (1,)), ((), ())),
                            preferred_element_type=f32)           # (tq, M)
    s = jnp.where(unmasked, s, neg)
    s = s - jnp.max(s, axis=-1, keepdims=True)
    p = jnp.exp(s)
    # one EUP reciprocal per row, folded into the PV result
    inv_l = pl.reciprocal(jnp.sum(p, axis=-1, keepdims=True), approx=True)
    pv = jnp.dot(p.astype(jnp.bfloat16), vw_ref[h],
                 preferred_element_type=f32)                      # (tq, E)
    acc = acc + pv * inv_l
  o_ref[...] = acc.astype(o_ref.dtype)


# ----------------------------------------------------------------------------
# Wrapper
# ----------------------------------------------------------------------------
def _pick_tile(m, max_tile, min_steps=2, gran=16):
  """Largest multiple-of-`gran` divisor of m that is <= max_tile and leaves at
  least `min_steps` grid steps (so both v7x TensorCores get work).  Falls back
  to the largest compliant divisor, then to m itself (single full block).
  gran=16 keeps bf16 intermediates on legal (16, 128) block tiling."""
  if m % gran != 0:
    return m
  best_split, best_any = None, None
  t = gran
  while t <= min(max_tile, m):
    if m % t == 0:
      best_any = t
      if m // t >= min_steps:
        best_split = t
    t += gran
  if best_split is not None:
    return best_split
  if best_any is not None:
    return best_any
  return m


def edge_mha_forward(params, node_tensors, edge_tensors, edge_index, n_heads,
                     q_tile=None, kv_tile=None):
  M, E = edge_tensors.shape
  N, node_dim = node_tensors.shape
  H = n_heads
  hd = E // H
  scale = 1.0 / math.sqrt(hd)
  bf16 = jnp.bfloat16

  q_tile = q_tile or _pick_tile(M, 256)
  kv_tile = kv_tile or _pick_tile(M, 512)
  assert M % q_tile == 0 and M % kv_tile == 0

  ei_t = edge_index.T.astype(jnp.int32)                           # (M, 2)

  # Fold the softmax scale into the Q-path weights/biases (zero kernel cost),
  # pre-concatenate the K/V weights, cast all matmul weights to bf16.
  wnq = (params["Wnq_w"] * scale).astype(bf16)
  bnq = (params["Wnq_b"] * scale).reshape(1, E)
  weq = (params["Weq_w"] * scale).astype(bf16)
  beq = (params["Weq_b"] * scale).reshape(1, E)
  wnkv = jnp.concatenate([params["Wnk_w"], params["Wnv_w"]], axis=1).astype(bf16)
  bnkv = jnp.concatenate([params["Wnk_b"], params["Wnv_b"]]).reshape(1, 2 * E)
  wekv = jnp.concatenate([params["Wek_w"], params["Wev_w"]], axis=1).astype(bf16)
  bekv = jnp.concatenate([params["Wek_b"], params["Wev_b"]]).reshape(1, 2 * E)
  wout = params["out_proj_w"].reshape(H, hd, E).astype(bf16)      # per-head rows
  bout = params["out_proj_b"].reshape(1, E)

  def full(shape):
    return pl.BlockSpec(shape, lambda i, _n=len(shape): (0,) * _n)

  cparams = pltpu.CompilerParams(
      dimension_semantics=("parallel",),
      vmem_limit_bytes=64 * 1024 * 1024)

  # ---- pass 1: per-edge projections / gather / incidence / out_proj-fold ----
  proj_kern = functools.partial(_edge_proj_kernel, n_heads=H)
  q_all, k_all, vw_all, inc_all = pl.pallas_call(
      proj_kern,
      grid=(M // kv_tile,),
      out_shape=(
          jax.ShapeDtypeStruct((M, E), bf16),         # Q (scale folded)
          jax.ShapeDtypeStruct((M, E), bf16),         # K
          jax.ShapeDtypeStruct((H, M, E), bf16),      # V @ Wout per head
          jax.ShapeDtypeStruct((M, N), bf16),         # edge-node incidence
      ),
      in_specs=[
          pl.BlockSpec((kv_tile, 2), lambda i: (i, 0)),   # edge_index tile
          pl.BlockSpec((kv_tile, E), lambda i: (i, 0)),   # edge feats tile
          full((N, node_dim)),                            # node feats
          full((node_dim, E)), full((1, E)),              # Wn_q, bn_q (scaled)
          full((node_dim, 2 * E)), full((1, 2 * E)),      # Wn_kv, bn_kv
          full((E, E)), full((1, E)),                     # We_q, be_q (scaled)
          full((E, 2 * E)), full((1, 2 * E)),             # We_kv, be_kv
          full((H, hd, E)),                               # W_out (per head)
      ],
      out_specs=(
          pl.BlockSpec((kv_tile, E), lambda i: (i, 0)),
          pl.BlockSpec((kv_tile, E), lambda i: (i, 0)),
          pl.BlockSpec((H, kv_tile, E), lambda i: (0, i, 0)),
          pl.BlockSpec((kv_tile, N), lambda i: (i, 0)),
      ),
      compiler_params=cparams,
  )(ei_t, edge_tensors, node_tensors,
    wnq, bnq, wnkv, bnkv, weq, beq, wekv, bekv, wout)

  # ---- pass 2: masked multi-head attention with folded out_proj -------------
  attn_kern = functools.partial(_edge_attn_kernel, n_heads=H)
  out = pl.pallas_call(
      attn_kern,
      grid=(M // q_tile,),
      out_shape=jax.ShapeDtypeStruct((M, E), jnp.float32),
      in_specs=[
          pl.BlockSpec((q_tile, E), lambda i: (i, 0)),    # Q tile
          pl.BlockSpec((q_tile, N), lambda i: (i, 0)),    # incidence rows (q)
          full((M, E)),                                   # K (all edges)
          full((H, M, E)),                                # V @ Wout (all edges)
          full((M, N)),                                   # incidence (all edges)
          full((1, E)),                                   # out_proj bias
      ],
      out_specs=pl.BlockSpec((q_tile, E), lambda i: (i, 0)),
      compiler_params=cparams,
  )(q_all, inc_all, k_all, vw_all, inc_all, bout)
  return out


# ----------------------------------------------------------------------------
# Parameter init (PyTorch Linear style, stored as (in, out) for x @ w)
# ----------------------------------------------------------------------------
def init_params(key, n_heads, node_dim, edge_dim):
  names_in = {
      "Wnq": node_dim, "Wnk": node_dim, "Wnv": node_dim,
      "Weq": edge_dim, "Wek": edge_dim, "Wev": edge_dim,
      "out_proj": edge_dim,
  }
  params = {}
  for name, fan_in in names_in.items():
    key, kw, kb = jax.random.split(key, 3)
    bound = 1.0 / math.sqrt(fan_in)
    params[name + "_w"] = jax.random.uniform(
        kw, (fan_in, edge_dim), jnp.float32, -bound, bound)
    params[name + "_b"] = jax.random.uniform(
        kb, (edge_dim,), jnp.float32, -bound, bound)
  return params


# ----------------------------------------------------------------------------
# Pure-JAX f32 reference mirroring the PyTorch gather/segment-softmax/scatter
# ----------------------------------------------------------------------------
def reference_forward(params, node_tensors, edge_tensors, edge_index, n_heads):
  edge_dim = edge_tensors.shape[1]
  head_dim = edge_dim // n_heads
  scale = 1.0 / math.sqrt(head_dim)
  N, M = node_tensors.shape[0], edge_tensors.shape[0]

  def lin(x, name):
    return x @ params[name + "_w"] + params[name + "_b"]

  def sep(x):
    return x.reshape(x.shape[0], n_heads, head_dim).transpose(1, 0, 2)

  eQ, eK, eV = (sep(lin(edge_tensors, "Weq")), sep(lin(edge_tensors, "Wek")),
                sep(lin(edge_tensors, "Wev")))
  nQ, nK, nV = (sep(lin(node_tensors, "Wnq")), sep(lin(node_tensors, "Wnk")),
                sep(lin(node_tensors, "Wnv")))

  inc = jnp.zeros((M, N), jnp.float32)
  inc = inc.at[jnp.arange(M), edge_index[0]].set(1.0)
  inc = inc.at[jnp.arange(M), edge_index[1]].set(1.0)
  neigh = inc @ inc.T
  i_idx, j_idx = jnp.nonzero(neigh)  # eager: data-dependent size is fine here

  Q = eQ[:, i_idx] + nQ[:, edge_index[0, i_idx]] + nQ[:, edge_index[1, i_idx]]
  K = eK[:, j_idx] + nK[:, edge_index[0, j_idx]] + nK[:, edge_index[1, j_idx]]
  score = (Q * K).sum(-1) * scale  # (H, P)

  seg_max = jnp.full((n_heads, M), -jnp.inf).at[:, i_idx].max(score)
  e = jnp.exp(score - seg_max[:, i_idx])
  seg_sum = jnp.zeros((n_heads, M)).at[:, i_idx].add(e)
  w = e / seg_sum[:, i_idx]

  V = eV[:, j_idx] + nV[:, edge_index[0, j_idx]] + nV[:, edge_index[1, j_idx]]
  upd = jnp.zeros((n_heads, M, head_dim)).at[:, i_idx].add(w[..., None] * V)
  out = upd.transpose(1, 0, 2).reshape(M, edge_dim)
  return out @ params["out_proj_w"] + params["out_proj_b"]


# ----------------------------------------------------------------------------
if __name__ == "__main__":
  n_heads = 4
  node_dim = 32      # must equal edge_dim (PyTorch concatenate_heads quirk)
  edge_dim = 32
  N = 8              # nodes
  M = 16             # edges

  key = jax.random.PRNGKey(0)
  kp, kn, ke, ki = jax.random.split(key, 4)

  params = init_params(kp, n_heads, node_dim, edge_dim)
  node_tensors = jax.random.normal(kn, (N, node_dim), jnp.float32)
  edge_tensors = jax.random.normal(ke, (M, edge_dim), jnp.float32)
  edge_index = jax.random.randint(ki, (2, M), 0, N, jnp.int32)

  out = edge_mha_forward(params, node_tensors, edge_tensors, edge_index, n_heads)
  out = jax.block_until_ready(out)

  ref = reference_forward(params, node_tensors, edge_tensors, edge_index, n_heads)
  assert out.shape == (M, edge_dim)
  # Tolerance reflects bf16 MXU operands + the EUP approx reciprocal in the
  # kernel vs. a pure-f32 reference (random outputs would give rel ~1.4).
  err = float(jnp.max(jnp.abs(out - ref)))
  rel = float(jnp.linalg.norm(out - ref) / jnp.linalg.norm(ref))
  assert err < 0.15 and rel < 5e-2, f"max abs err {err:.4g}, rel l2 {rel:.4g}"
  print("KERNEL_OK")
</pallas_src>

<mosaic_0001>
module attributes {stable_mosaic.version = 11 : i64} {
  func.func @_edge_proj_kernel(%arg0: i32, %arg1: memref<16x2xi32, #tpu.memory_space<vmem>>, %arg2: memref<16x32xf32, #tpu.memory_space<vmem>>, %arg3: memref<8x32xf32, #tpu.memory_space<vmem>>, %arg4: memref<32x32xbf16, #tpu.memory_space<vmem>>, %arg5: memref<1x32xf32, #tpu.memory_space<vmem>>, %arg6: memref<32x64xbf16, #tpu.memory_space<vmem>>, %arg7: memref<1x64xf32, #tpu.memory_space<vmem>>, %arg8: memref<32x32xbf16, #tpu.memory_space<vmem>>, %arg9: memref<1x32xf32, #tpu.memory_space<vmem>>, %arg10: memref<32x64xbf16, #tpu.memory_space<vmem>>, %arg11: memref<1x64xf32, #tpu.memory_space<vmem>>, %arg12: memref<4x8x32xbf16, #tpu.memory_space<vmem>>, %arg13: memref<16x32xbf16, #tpu.memory_space<vmem>>, %arg14: memref<16x32xbf16, #tpu.memory_space<vmem>>, %arg15: memref<4x16x32xbf16, #tpu.memory_space<vmem>>, %arg16: memref<16x8xbf16, #tpu.memory_space<vmem>>) attributes {dimension_semantics = [#tpu.dimension_semantics<parallel>], iteration_bounds = array<i64: 1>, scalar_prefetch = 0 : i64, scratch_operands = 0 : i64, tpu.core_type = #tpu.core_type<tc>, window_params = [{transform_indices = @transform_0, window_bounds = array<i64: 16, 2>}, {transform_indices = @transform_1, window_bounds = array<i64: 16, 32>}, {pipeline_mode = #tpu.pipeline_mode<synchronous>, transform_indices = @transform_2, window_bounds = array<i64: 8, 32>}, {pipeline_mode = #tpu.pipeline_mode<synchronous>, transform_indices = @transform_3, window_bounds = array<i64: 32, 32>}, {pipeline_mode = #tpu.pipeline_mode<synchronous>, transform_indices = @transform_4, window_bounds = array<i64: 1, 32>}, {pipeline_mode = #tpu.pipeline_mode<synchronous>, transform_indices = @transform_5, window_bounds = array<i64: 32, 64>}, {pipeline_mode = #tpu.pipeline_mode<synchronous>, transform_indices = @transform_6, window_bounds = array<i64: 1, 64>}, {pipeline_mode = #tpu.pipeline_mode<synchronous>, transform_indices = @transform_7, window_bounds = array<i64: 32, 32>}, {pipeline_mode = #tpu.pipeline_mode<synchronous>, transform_indices = @transform_8, window_bounds = array<i64: 1, 32>}, {pipeline_mode = #tpu.pipeline_mode<synchronous>, transform_indices = @transform_9, window_bounds = array<i64: 32, 64>}, {pipeline_mode = #tpu.pipeline_mode<synchronous>, transform_indices = @transform_10, window_bounds = array<i64: 1, 64>}, {pipeline_mode = #tpu.pipeline_mode<synchronous>, transform_indices = @transform_11, window_bounds = array<i64: 4, 8, 32>}, {transform_indices = @transform_12, window_bounds = array<i64: 16, 32>}, {transform_indices = @transform_13, window_bounds = array<i64: 16, 32>}, {transform_indices = @transform_14, window_bounds = array<i64: 4, 16, 32>}, {transform_indices = @transform_15, window_bounds = array<i64: 16, 8>}]} {
    %c0 = arith.constant 0 : index
    %c0_0 = arith.constant 0 : index
    %0 = vector.load %arg1[%c0, %c0_0] : memref<16x2xi32, #tpu.memory_space<vmem>>, vector<16x2xi32>
    %1 = vector.extract_strided_slice %0 {offsets = [0, 0], sizes = [16, 1], strides = [1, 1]} : vector<16x2xi32> to vector<16x1xi32>
    %2 = vector.extract_strided_slice %0 {offsets = [0, 1], sizes = [16, 1], strides = [1, 1]} : vector<16x2xi32> to vector<16x1xi32>
    %3 = tpu.iota {dimensions = array<i32: 1>} : vector<16x8xi32>
    %4 = vector.broadcast %1 : vector<16x1xi32> to vector<16x8xi32>
    %5 = arith.cmpi eq, %4, %3 : vector<16x8xi32>
    %6 = arith.extui %5 : vector<16x8xi1> to vector<16x8xi32>
    %7 = arith.sitofp %6 : vector<16x8xi32> to vector<16x8xf32>
    %8 = arith.truncf %7 : vector<16x8xf32> to vector<16x8xbf16>
    %9 = vector.broadcast %2 : vector<16x1xi32> to vector<16x8xi32>
    %10 = arith.cmpi eq, %9, %3 : vector<16x8xi32>
    %11 = arith.extui %10 : vector<16x8xi1> to vector<16x8xi32>
    %12 = arith.sitofp %11 : vector<16x8xi32> to vector<16x8xf32>
    %13 = arith.truncf %12 : vector<16x8xf32> to vector<16x8xbf16>
    %14 = arith.addf %8, %13 : vector<16x8xbf16>
    %15 = arith.maximumf %8, %13 : vector<16x8xbf16>
    %c0_1 = arith.constant 0 : index
    %c0_2 = arith.constant 0 : index
    %16 = vector.load %arg16[%c0_1, %c0_2] : memref<16x8xbf16, #tpu.memory_space<vmem>>, vector<16x8xbf16>
    tpu.vector_store %arg16[%c0_1, %c0_2], %15 {strides = array<i32>} : memref<16x8xbf16, #tpu.memory_space<vmem>>, vector<16x8xbf16>,
    %c0_3 = arith.constant 0 : index
    %c0_4 = arith.constant 0 : index
    %17 = vector.load %arg3[%c0_3, %c0_4] : memref<8x32xf32, #tpu.memory_space<vmem>>, vector<8x32xf32>
    %18 = arith.truncf %17 : vector<8x32xf32> to vector<8x32xbf16>
    %c0_5 = arith.constant 0 : index
    %c0_6 = arith.constant 0 : index
    %19 = vector.load %arg2[%c0_5, %c0_6] : memref<16x32xf32, #tpu.memory_space<vmem>>, vector<16x32xf32>
    %20 = arith.truncf %19 : vector<16x32xf32> to vector<16x32xbf16>
    %c0_7 = arith.constant 0 : index
    %c0_8 = arith.constant 0 : index
    %21 = vector.load %arg4[%c0_7, %c0_8] : memref<32x32xbf16, #tpu.memory_space<vmem>>, vector<32x32xbf16>
    %cst = arith.constant dense<0.000000e+00> : vector<8x32xf32>
    %22 = tpu.matmul %18, %21, %cst {dimension_numbers = #tpu.dot_dimension_numbers<[1], [0], [0], [1], [0, 0, 1, 1], [], []>} : vector<8x32xbf16>, vector<32x32xbf16>, vector<8x32xf32> -> vector<8x32xf32>
    %c0_9 = arith.constant 0 : index
    %c0_10 = arith.constant 0 : index
    %23 = vector.load %arg5[%c0_9, %c0_10] : memref<1x32xf32, #tpu.memory_space<vmem>>, vector<1x32xf32>
    %24 = vector.broadcast %23 : vector<1x32xf32> to vector<8x32xf32>
    %25 = arith.addf %22, %24 : vector<8x32xf32>
    %c0_11 = arith.constant 0 : index
    %c0_12 = arith.constant 0 : index
    %26 = vector.load %arg6[%c0_11, %c0_12] : memref<32x64xbf16, #tpu.memory_space<vmem>>, vector<32x64xbf16>
    %cst_13 = arith.constant dense<0.000000e+00> : vector<8x64xf32>
    %27 = tpu.matmul %18, %26, %cst_13 {dimension_numbers = #tpu.dot_dimension_numbers<[1], [0], [0], [1], [0, 0, 1, 1], [], []>} : vector<8x32xbf16>, vector<32x64xbf16>, vector<8x64xf32> -> vector<8x64xf32>
    %c0_14 = arith.constant 0 : index
    %c0_15 = arith.constant 0 : index
    %28 = vector.load %arg7[%c0_14, %c0_15] : memref<1x64xf32, #tpu.memory_space<vmem>>, vector<1x64xf32>
    %29 = vector.broadcast %28 : vector<1x64xf32> to vector<8x64xf32>
    %30 = arith.addf %27, %29 : vector<8x64xf32>
    %c0_16 = arith.constant 0 : index
    %c0_17 = arith.constant 0 : index
    %31 = vector.load %arg8[%c0_16, %c0_17] : memref<32x32xbf16, #tpu.memory_space<vmem>>, vector<32x32xbf16>
    %cst_18 = arith.constant dense<0.000000e+00> : vector<16x32xf32>
    %32 = tpu.matmul %20, %31, %cst_18 {dimension_numbers = #tpu.dot_dimension_numbers<[1], [0], [0], [1], [0, 0, 1, 1], [], []>} : vector<16x32xbf16>, vector<32x32xbf16>, vector<16x32xf32> -> vector<16x32xf32>
    %c0_19 = arith.constant 0 : index
    %c0_20 = arith.constant 0 : index
    %33 = vector.load %arg9[%c0_19, %c0_20] : memref<1x32xf32, #tpu.memory_space<vmem>>, vector<1x32xf32>
    %34 = vector.broadcast %33 : vector<1x32xf32> to vector<16x32xf32>
    %35 = arith.addf %32, %34 : vector<16x32xf32>
    %36 = arith.truncf %25 : vector<8x32xf32> to vector<8x32xbf16>
    %cst_21 = arith.constant dense<0.000000e+00> : vector<16x32xf32>
    %37 = tpu.matmul %14, %36, %cst_21 {dimension_numbers = #tpu.dot_dimension_numbers<[1], [0], [0], [1], [0, 0, 1, 1], [], []>} : vector<16x8xbf16>, vector<8x32xbf16>, vector<16x32xf32> -> vector<16x32xf32>
    %38 = arith.addf %35, %37 : vector<16x32xf32>
    %c0_22 = arith.constant 0 : index
    %c0_23 = arith.constant 0 : index
    %39 = vector.load %arg10[%c0_22, %c0_23] : memref<32x64xbf16, #tpu.memory_space<vmem>>, vector<32x64xbf16>
    %cst_24 = arith.constant dense<0.000000e+00> : vector<16x64xf32>
    %40 = tpu.matmul %20, %39, %cst_24 {dimension_numbers = #tpu.dot_dimension_numbers<[1], [0], [0], [1], [0, 0, 1, 1], [], []>} : vector<16x32xbf16>, vector<32x64xbf16>, vector<16x64xf32> -> vector<16x64xf32>
    %c0_25 = arith.constant 0 : index
    %c0_26 = arith.constant 0 : index
    %41 = vector.load %arg11[%c0_25, %c0_26] : memref<1x64xf32, #tpu.memory_space<vmem>>, vector<1x64xf32>
    %42 = vector.broadcast %41 : vector<1x64xf32> to vector<16x64xf32>
    %43 = arith.addf %40, %42 : vector<16x64xf32>
    %44 = arith.truncf %30 : vector<8x64xf32> to vector<8x64xbf16>
    %cst_27 = arith.constant dense<0.000000e+00> : vector<16x64xf32>
    %45 = tpu.matmul %14, %44, %cst_27 {dimension_numbers = #tpu.dot_dimension_numbers<[1], [0], [0], [1], [0, 0, 1, 1], [], []>} : vector<16x8xbf16>, vector<8x64xbf16>, vector<16x64xf32> -> vector<16x64xf32>
    %46 = arith.addf %43, %45 : vector<16x64xf32>
    %47 = arith.truncf %38 : vector<16x32xf32> to vector<16x32xbf16>
    %c0_28 = arith.constant 0 : index
    %c0_29 = arith.constant 0 : index
    %48 = vector.load %arg13[%c0_28, %c0_29] : memref<16x32xbf16, #tpu.memory_space<vmem>>, vector<16x32xbf16>
    tpu.vector_store %arg13[%c0_28, %c0_29], %47 {strides = array<i32>} : memref<16x32xbf16, #tpu.memory_space<vmem>>, vector<16x32xbf16>,
    %49 = vector.extract_strided_slice %46 {offsets = [0, 0], sizes = [16, 32], strides = [1, 1]} : vector<16x64xf32> to vector<16x32xf32>
    %50 = arith.truncf %49 : vector<16x32xf32> to vector<16x32xbf16>
    %c0_30 = arith.constant 0 : index
    %c0_31 = arith.constant 0 : index
    %51 = vector.load %arg14[%c0_30, %c0_31] : memref<16x32xbf16, #tpu.memory_space<vmem>>, vector<16x32xbf16>
    tpu.vector_store %arg14[%c0_30, %c0_31], %50 {strides = array<i32>} : memref<16x32xbf16, #tpu.memory_space<vmem>>, vector<16x32xbf16>,
    %52 = vector.extract_strided_slice %46 {offsets = [0, 32], sizes = [16, 32], strides = [1, 1]} : vector<16x64xf32> to vector<16x32xf32>
    %53 = arith.truncf %52 : vector<16x32xf32> to vector<16x32xbf16>
    %54 = vector.extract_strided_slice %53 {offsets = [0, 0], sizes = [16, 8], strides = [1, 1]} : vector<16x32xbf16> to vector<16x8xbf16>
    %c0_32 = arith.constant 0 : index
    %c0_33 = arith.constant 0 : index
    %c0_34 = arith.constant 0 : index
    %55 = vector.load %arg12[%c0_32, %c0_33, %c0_34] : memref<4x8x32xbf16, #tpu.memory_space<vmem>>, vector<1x8x32xbf16>
    %56 = vector.shape_cast %55 : vector<1x8x32xbf16> to vector<8x32xbf16>
    %cst_35 = arith.constant dense<0.000000e+00> : vector<16x32xf32>
    %57 = tpu.matmul %54, %56, %cst_35 {dimension_numbers = #tpu.dot_dimension_numbers<[1], [0], [0], [1], [0, 0, 1, 1], [], []>} : vector<16x8xbf16>, vector<8x32xbf16>, vector<16x32xf32> -> vector<16x32xf32>
    %58 = arith.truncf %57 : vector<16x32xf32> to vector<16x32xbf16>
    %c0_36 = arith.constant 0 : index
    %c0_37 = arith.constant 0 : index
    %c0_38 = arith.constant 0 : index
    %59 = vector.load %arg15[%c0_36, %c0_37, %c0_38] : memref<4x16x32xbf16, #tpu.memory_space<vmem>>, vector<1x16x32xbf16>
    %60 = vector.shape_cast %59 : vector<1x16x32xbf16> to vector<16x32xbf16>
    %61 = vector.shape_cast %58 : vector<16x32xbf16> to vector<1x16x32xbf16>
    tpu.vector_store %arg15[%c0_36, %c0_37, %c0_38], %61 {strides = array<i32>} : memref<4x16x32xbf16, #tpu.memory_space<vmem>>, vector<1x16x32xbf16>,
    %62 = vector.extract_strided_slice %53 {offsets = [0, 8], sizes = [16, 8], strides = [1, 1]} : vector<16x32xbf16> to vector<16x8xbf16>
    %c1 = arith.constant 1 : index
    %c0_39 = arith.constant 0 : index
    %c0_40 = arith.constant 0 : index
    %63 = vector.load %arg12[%c1, %c0_39, %c0_40] : memref<4x8x32xbf16, #tpu.memory_space<vmem>>, vector<1x8x32xbf16>
    %64 = vector.shape_cast %63 : vector<1x8x32xbf16> to vector<8x32xbf16>
    %cst_41 = arith.constant dense<0.000000e+00> : vector<16x32xf32>
    %65 = tpu.matmul %62, %64, %cst_41 {dimension_numbers = #tpu.dot_dimension_numbers<[1], [0], [0], [1], [0, 0, 1, 1], [], []>} : vector<16x8xbf16>, vector<8x32xbf16>, vector<16x32xf32> -> vector<16x32xf32>
    %66 = arith.truncf %65 : vector<16x32xf32> to vector<16x32xbf16>
    %c1_42 = arith.constant 1 : index
    %c0_43 = arith.constant 0 : index
    %c0_44 = arith.constant 0 : index
    %67 = vector.load %arg15[%c1_42, %c0_43, %c0_44] : memref<4x16x32xbf16, #tpu.memory_space<vmem>>, vector<1x16x32xbf16>
    %68 = vector.shape_cast %67 : vector<1x16x32xbf16> to vector<16x32xbf16>
    %69 = vector.shape_cast %66 : vector<16x32xbf16> to vector<1x16x32xbf16>
    tpu.vector_store %arg15[%c1_42, %c0_43, %c0_44], %69 {strides = array<i32>} : memref<4x16x32xbf16, #tpu.memory_space<vmem>>, vector<1x16x32xbf16>,
    %70 = vector.extract_strided_slice %53 {offsets = [0, 16], sizes = [16, 8], strides = [1, 1]} : vector<16x32xbf16> to vector<16x8xbf16>
    %c2 = arith.constant 2 : index
    %c0_45 = arith.constant 0 : index
    %c0_46 = arith.constant 0 : index
    %71 = vector.load %arg12[%c2, %c0_45, %c0_46] : memref<4x8x32xbf16, #tpu.memory_space<vmem>>, vector<1x8x32xbf16>
    %72 = vector.shape_cast %71 : vector<1x8x32xbf16> to vector<8x32xbf16>
    %cst_47 = arith.constant dense<0.000000e+00> : vector<16x32xf32>
    %73 = tpu.matmul %70, %72, %cst_47 {dimension_numbers = #tpu.dot_dimension_numbers<[1], [0], [0], [1], [0, 0, 1, 1], [], []>} : vector<16x8xbf16>, vector<8x32xbf16>, vector<16x32xf32> -> vector<16x32xf32>
    %74 = arith.truncf %73 : vector<16x32xf32> to vector<16x32xbf16>
    %c2_48 = arith.constant 2 : index
    %c0_49 = arith.constant 0 : index
    %c0_50 = arith.constant 0 : index
    %75 = vector.load %arg15[%c2_48, %c0_49, %c0_50] : memref<4x16x32xbf16, #tpu.memory_space<vmem>>, vector<1x16x32xbf16>
    %76 = vector.shape_cast %75 : vector<1x16x32xbf16> to vector<16x32xbf16>
    %77 = vector.shape_cast %74 : vector<16x32xbf16> to vector<1x16x32xbf16>
    tpu.vector_store %arg15[%c2_48, %c0_49, %c0_50], %77 {strides = array<i32>} : memref<4x16x32xbf16, #tpu.memory_space<vmem>>, vector<1x16x32xbf16>,
    %78 = vector.extract_strided_slice %53 {offsets = [0, 24], sizes = [16, 8], strides = [1, 1]} : vector<16x32xbf16> to vector<16x8xbf16>
    %c3 = arith.constant 3 : index
    %c0_51 = arith.constant 0 : index
    %c0_52 = arith.constant 0 : index
    %79 = vector.load %arg12[%c3, %c0_51, %c0_52] : memref<4x8x32xbf16, #tpu.memory_space<vmem>>, vector<1x8x32xbf16>
    %80 = vector.shape_cast %79 : vector<1x8x32xbf16> to vector<8x32xbf16>
    %cst_53 = arith.constant dense<0.000000e+00> : vector<16x32xf32>
    %81 = tpu.matmul %78, %80, %cst_53 {dimension_numbers = #tpu.dot_dimension_numbers<[1], [0], [0], [1], [0, 0, 1, 1], [], []>} : vector<16x8xbf16>, vector<8x32xbf16>, vector<16x32xf32> -> vector<16x32xf32>
    %82 = arith.truncf %81 : vector<16x32xf32> to vector<16x32xbf16>
    %c3_54 = arith.constant 3 : index
    %c0_55 = arith.constant 0 : index
    %c0_56 = arith.constant 0 : index
    %83 = vector.load %arg15[%c3_54, %c0_55, %c0_56] : memref<4x16x32xbf16, #tpu.memory_space<vmem>>, vector<1x16x32xbf16>
    %84 = vector.shape_cast %83 : vector<1x16x32xbf16> to vector<16x32xbf16>
    %85 = vector.shape_cast %82 : vector<16x32xbf16> to vector<1x16x32xbf16>
    tpu.vector_store %arg15[%c3_54, %c0_55, %c0_56], %85 {strides = array<i32>} : memref<4x16x32xbf16, #tpu.memory_space<vmem>>, vector<1x16x32xbf16>,
    return
  }
  func.func @transform_0(%arg0: i32) -> (i32, i32) {
    %c0_i32 = arith.constant 0 : i32
    %c0_i32_0 = arith.constant 0 : i32
    return %arg0, %c0_i32 : i32, i32
  }
  func.func @transform_1(%arg0: i32) -> (i32, i32) {
    %c0_i32 = arith.constant 0 : i32
    %c0_i32_0 = arith.constant 0 : i32
    return %arg0, %c0_i32 : i32, i32
  }
  func.func @transform_2(%arg0: i32) -> (i32, i32) {
    %c0_i32 = arith.constant 0 : i32
    %c0_i32_0 = arith.constant 0 : i32
    %c0_i32_1 = arith.constant 0 : i32
    return %c0_i32, %c0_i32_0 : i32, i32
  }
  func.func @transform_3(%arg0: i32) -> (i32, i32) {
    %c0_i32 = arith.constant 0 : i32
    %c0_i32_0 = arith.constant 0 : i32
    %c0_i32_1 = arith.constant 0 : i32
    return %c0_i32, %c0_i32_0 : i32, i32
  }
  func.func @transform_4(%arg0: i32) -> (i32, i32) {
    %c0_i32 = arith.constant 0 : i32
    %c0_i32_0 = arith.constant 0 : i32
    %c0_i32_1 = arith.constant 0 : i32
    return %c0_i32, %c0_i32_0 : i32, i32
  }
  func.func @transform_5(%arg0: i32) -> (i32, i32) {
    %c0_i32 = arith.constant 0 : i32
    %c0_i32_0 = arith.constant 0 : i32
    %c0_i32_1 = arith.constant 0 : i32
    return %c0_i32, %c0_i32_0 : i32, i32
  }
  func.func @transform_6(%arg0: i32) -> (i32, i32) {
    %c0_i32 = arith.constant 0 : i32
    %c0_i32_0 = arith.constant 0 : i32
    %c0_i32_1 = arith.constant 0 : i32
    return %c0_i32, %c0_i32_0 : i32, i32
  }
  func.func @transform_7(%arg0: i32) -> (i32, i32) {
    %c0_i32 = arith.constant 0 : i32
    %c0_i32_0 = arith.constant 0 : i32
    %c0_i32_1 = arith.constant 0 : i32
    return %c0_i32, %c0_i32_0 : i32, i32
  }
  func.func @transform_8(%arg0: i32) -> (i32, i32) {
    %c0_i32 = arith.constant 0 : i32
    %c0_i32_0 = arith.constant 0 : i32
    %c0_i32_1 = arith.constant 0 : i32
    return %c0_i32, %c0_i32_0 : i32, i32
  }
  func.func @transform_9(%arg0: i32) -> (i32, i32) {
    %c0_i32 = arith.constant 0 : i32
    %c0_i32_0 = arith.constant 0 : i32
    %c0_i32_1 = arith.constant 0 : i32
    return %c0_i32, %c0_i32_0 : i32, i32
  }
  func.func @transform_10(%arg0: i32) -> (i32, i32) {
    %c0_i32 = arith.constant 0 : i32
    %c0_i32_0 = arith.constant 0 : i32
    %c0_i32_1 = arith.constant 0 : i32
    return %c0_i32, %c0_i32_0 : i32, i32
  }
  func.func @transform_11(%arg0: i32) -> (i32, i32, i32) {
    %c0_i32 = arith.constant 0 : i32
    %c0_i32_0 = arith.constant 0 : i32
    %c0_i32_1 = arith.constant 0 : i32
    %c0_i32_2 = arith.constant 0 : i32
    return %c0_i32, %c0_i32_0, %c0_i32_1 : i32, i32, i32
  }
  func.func @transform_12(%arg0: i32) -> (i32, i32) {
    %c0_i32 = arith.constant 0 : i32
    %c0_i32_0 = arith.constant 0 : i32
    return %arg0, %c0_i32 : i32, i32
  }
  func.func @transform_13(%arg0: i32) -> (i32, i32) {
    %c0_i32 = arith.constant 0 : i32
    %c0_i32_0 = arith.constant 0 : i32
    return %arg0, %c0_i32 : i32, i32
  }
  func.func @transform_14(%arg0: i32) -> (i32, i32, i32) {
    %c0_i32 = arith.constant 0 : i32
    %c0_i32_0 = arith.constant 0 : i32
    %c0_i32_1 = arith.constant 0 : i32
    return %c0_i32, %arg0, %c0_i32_0 : i32, i32, i32
  }
  func.func @transform_15(%arg0: i32) -> (i32, i32) {
    %c0_i32 = arith.constant 0 : i32
    %c0_i32_0 = arith.constant 0 : i32
    return %arg0, %c0_i32 : i32, i32
  }
}

</mosaic_0001>

<llo_original>
// kernel: tpu_custom_call.1
$region0: #{tpu_custom_call.1}
  #allocation0 [shape = 'u32[]', space=smem, size = 0x4, offset = 0x4, fixed_abs, tag = 'smem constant byte address 0x4 - core index']
  #allocation1 [shape = 'u32[72,128]{1,0:T(1,128)}', space=vmem, size = 0x9000, scoped, tag = 'internal scratch']
  %s0 = inlined_call_operand.vmem [shape: s32[16,2], index: 0, kind: input, shape index: {}]
  %s1 = inlined_call_operand.vmem [shape: f32[16,32], index: 1, kind: input, shape index: {}]
  %s2 = inlined_call_operand.hbm [shape: f32[8,32], index: 2, kind: input, shape index: {}]
  %s3 = inlined_call_operand.hbm [shape: bf16[32,32], index: 3, kind: input, shape index: {}]
  %s4 = inlined_call_operand.vmem [shape: f32[1,32], index: 4, kind: input, shape index: {}]
  %s5 = inlined_call_operand.hbm [shape: bf16[32,64], index: 5, kind: input, shape index: {}]
  %s6 = inlined_call_operand.vmem [shape: f32[1,64], index: 6, kind: input, shape index: {}]
  %s7 = inlined_call_operand.hbm [shape: bf16[32,32], index: 7, kind: input, shape index: {}]
  %s8 = inlined_call_operand.vmem [shape: f32[1,32], index: 8, kind: input, shape index: {}]
  %s9 = inlined_call_operand.hbm [shape: bf16[32,64], index: 9, kind: input, shape index: {}]
  %s10 = inlined_call_operand.vmem [shape: f32[1,64], index: 10, kind: input, shape index: {}]
  %s11 = inlined_call_operand.hbm [shape: bf16[4,8,32], index: 11, kind: input, shape index: {}]
  %s12 = inlined_call_operand.hbm [shape: bf16[16,32], index: 12, kind: output, shape index: {0}]
  %s13 = inlined_call_operand.hbm [shape: bf16[16,32], index: 13, kind: output, shape index: {1}]
  %s14 = inlined_call_operand.hbm [shape: bf16[4,16,32], index: 14, kind: output, shape index: {2}]
  %s15 = inlined_call_operand.vmem [shape: bf16[16,8], index: 15, kind: output, shape index: {3}]
  %16 = xla_tuple %s12, %s13, %s14, %s15
  %s17 = sld [smem:[#allocation0]]
  $region106: #{tpu_custom_call.1} parent=0
    _
  %s19 = ssub.s32 1, %s17
  %s20 = scalar_select 0, %s19, %s17
  $region1: #{tpu_custom_call.1} parent=0
    #allocation2 [shape = 'u8[4096]{0}', space=vmem, size = 0x1000, scoped, tag = 'input window, operand 2, single buffered']
    #allocation3 [shape = 's32[1]{0}', space=sflag, size = 0x4, scoped, tag = 'scoped memory for tpu_custom_call.1']
    #allocation4 [shape = 's32[1]{0}', space=sflag, size = 0x4, scoped, tag = 'scoped memory for tpu_custom_call.1']
    #allocation5 [shape = 'u8[8192]{0}', space=vmem, size = 0x2000, scoped, tag = 'input window, operand 3, single buffered']
    #allocation6 [shape = 's32[1]{0}', space=sflag, size = 0x4, scoped, tag = 'scoped memory for tpu_custom_call.1']
    #allocation7 [shape = 'u8[8192]{0}', space=vmem, size = 0x2000, scoped, tag = 'input window, operand 5, single buffered']
    #allocation8 [shape = 'u8[8192]{0}', space=vmem, size = 0x2000, scoped, tag = 'input window, operand 7, single buffered']
    #allocation9 [shape = 's32[1]{0}', space=sflag, size = 0x4, scoped, tag = 'scoped memory for tpu_custom_call.1']
    #allocation10 [shape = 'u8[8192]{0}', space=vmem, size = 0x2000, scoped, tag = 'input window, operand 9, single buffered']
    #allocation11 [shape = 'u8[8192]{0}', space=vmem, size = 0x2000, scoped, tag = 'input window, operand 11, single buffered']
    #allocation12 [shape = 's32[1]{0}', space=sflag, size = 0x4, scoped, tag = 'scoped memory for tpu_custom_call.1']
    #allocation13 [shape = 'u8[4096]{0}', space=vmem, size = 0x1000, scoped, tag = 'output window, operand 0, single buffered']
    #allocation14 [shape = 'u8[4096]{0}', space=vmem, size = 0x1000, scoped, tag = 'output window, operand 1, single buffered']
    #allocation15 [shape = 's32[1]{0}', space=sflag, size = 0x4, scoped, tag = 'scoped memory for tpu_custom_call.1']
    #allocation16 [shape = 'u8[16384]{0}', space=vmem, size = 0x4000, scoped, tag = 'output window, operand 2, single buffered']
    %21 = vsyncpa [#allocation3], 0
    %22 = vsyncpa [#allocation6], 0
    %23 = vsyncpa [#allocation9], 0
    %24 = vsyncpa [#allocation12], 0
    %25 = vsyncpa [#allocation4], 0
    %26 = vsyncpa [#allocation15], 0
    // Predicated region
    $region2: #{tpu_custom_call.1} parent=1 // pred_check
      _
    $region3: #{tpu_custom_call.1} parent=1 // pred_check_branch
      %28 = sbr.rel (0) target = $region5
    $region4: #{tpu_custom_call.1} parent=1 // pred_region
      _
    $region5: #{tpu_custom_call.1} parent=1 // pred_fallthru
      _
    // Predicated region
    $region6: #{tpu_custom_call.1} parent=1 // pred_check
      _
    $region7: #{tpu_custom_call.1} parent=1 // pred_check_branch
      %30 = sbr.rel (0) target = $region9
    $region8: #{tpu_custom_call.1} parent=1 // pred_region
      _
    $region9: #{tpu_custom_call.1} parent=1 // pred_fallthru
      _
    // Predicated region
    $region10: #{tpu_custom_call.1} parent=1 // pred_check
      _
    $region11: #{tpu_custom_call.1} parent=1 // pred_check_branch
      %32 = sbr.rel (0) target = $region13
    $region12: #{tpu_custom_call.1} parent=1 // pred_region
      %34 = vsyncadd [#allocation3], 0
      %s36 = sshll.u32 %s2, 4
      %s37 = int_to_ptr.hbm [resolvable:$true] %s36
      %s38 = sshll.u32 [#allocation2], 4
      %s39 = int_to_ptr.vmem [resolvable:$true] %s38
      %41 = dma.hbm_to_vmem [thread:$0]  %s37, 128, %s39, [#allocation3]
    $region13: #{tpu_custom_call.1} parent=1 // pred_fallthru
      _
    // Predicated region
    $region14: #{tpu_custom_call.1} parent=1 // pred_check
      _
    $region15: #{tpu_custom_call.1} parent=1 // pred_check_branch
      %43 = sbr.rel (0) target = $region17
    $region16: #{tpu_custom_call.1} parent=1 // pred_region
      %45 = vsyncadd [#allocation6], 0
      %s46 = sshll.u32 %s3, 4
      %s47 = int_to_ptr.hbm [resolvable:$true] %s46
      %s48 = sshll.u32 [#allocation5], 4
      %s49 = int_to_ptr.vmem [resolvable:$true] %s48
      %54 = dma.hbm_to_vmem [thread:$0]  %s47, 256, %s49, [#allocation6], 64, 64, 4
    $region17: #{tpu_custom_call.1} parent=1 // pred_fallthru
      _
    // Predicated region
    $region18: #{tpu_custom_call.1} parent=1 // pred_check
      _
    $region19: #{tpu_custom_call.1} parent=1 // pred_check_branch
      %56 = sbr.rel (0) target = $region21
    $region20: #{tpu_custom_call.1} parent=1 // pred_region
      _
    $region21: #{tpu_custom_call.1} parent=1 // pred_fallthru
      _
    // Predicated region
    $region22: #{tpu_custom_call.1} parent=1 // pred_check
      _
    $region23: #{tpu_custom_call.1} parent=1 // pred_check_branch
      %58 = sbr.rel (0) target = $region25
    $region24: #{tpu_custom_call.1} parent=1 // pred_region
      %60 = vsyncadd [#allocation6], 0
      %s61 = sshll.u32 %s5, 4
      %s62 = int_to_ptr.hbm [resolvable:$true] %s61
      %s63 = sshll.u32 [#allocation7], 4
      %s64 = int_to_ptr.vmem [resolvable:$true] %s63
      %69 = dma.hbm_to_vmem [thread:$0]  %s62, 256, %s64, [#allocation6], 64, 64, 4
    $region25: #{tpu_custom_call.1} parent=1 // pred_fallthru
      _
    // Predicated region
    $region26: #{tpu_custom_call.1} parent=1 // pred_check
      _
    $region27: #{tpu_custom_call.1} parent=1 // pred_check_branch
      %71 = sbr.rel (0) target = $region29
    $region28: #{tpu_custom_call.1} parent=1 // pred_region
      _
    $region29: #{tpu_custom_call.1} parent=1 // pred_fallthru
      _
    // Predicated region
    $region30: #{tpu_custom_call.1} parent=1 // pred_check
      _
    $region31: #{tpu_custom_call.1} parent=1 // pred_check_branch
      %73 = sbr.rel (0) target = $region33
    $region32: #{tpu_custom_call.1} parent=1 // pred_region
      %75 = vsyncadd [#allocation9], 0
      %s76 = sshll.u32 %s7, 4
      %s77 = int_to_ptr.hbm [resolvable:$true] %s76
      %s78 = sshll.u32 [#allocation8], 4
      %s79 = int_to_ptr.vmem [resolvable:$true] %s78
      %84 = dma.hbm_to_vmem [thread:$0]  %s77, 256, %s79, [#allocation9], 64, 64, 4
    $region33: #{tpu_custom_call.1} parent=1 // pred_fallthru
      _
    // Predicated region
    $region34: #{tpu_custom_call.1} parent=1 // pred_check
      _
    $region35: #{tpu_custom_call.1} parent=1 // pred_check_branch
      %86 = sbr.rel (0) target = $region37
    $region36: #{tpu_custom_call.1} parent=1 // pred_region
      _
    $region37: #{tpu_custom_call.1} parent=1 // pred_fallthru
      _
    // Predicated region
    $region38: #{tpu_custom_call.1} parent=1 // pred_check
      _
    $region39: #{tpu_custom_call.1} parent=1 // pred_check_branch
      %88 = sbr.rel (0) target = $region41
    $region40: #{tpu_custom_call.1} parent=1 // pred_region
      %90 = vsyncadd [#allocation9], 0
      %s91 = sshll.u32 %s9, 4
      %s92 = int_to_ptr.hbm [resolvable:$true] %s91
      %s93 = sshll.u32 [#allocation10], 4
      %s94 = int_to_ptr.vmem [resolvable:$true] %s93
      %99 = dma.hbm_to_vmem [thread:$0]  %s92, 256, %s94, [#allocation9], 64, 64, 4
    $region41: #{tpu_custom_call.1} parent=1 // pred_fallthru
      _
    // Predicated region
    $region42: #{tpu_custom_call.1} parent=1 // pred_check
      _
    $region43: #{tpu_custom_call.1} parent=1 // pred_check_branch
      %101 = sbr.rel (0) target = $region45
    $region44: #{tpu_custom_call.1} parent=1 // pred_region
      _
    $region45: #{tpu_custom_call.1} parent=1 // pred_fallthru
      _
    // Predicated region
    $region46: #{tpu_custom_call.1} parent=1 // pred_check
      _
    $region47: #{tpu_custom_call.1} parent=1 // pred_check_branch
      %103 = sbr.rel (0) target = $region49
    $region48: #{tpu_custom_call.1} parent=1 // pred_region
      %105 = vsyncadd [#allocation12], 0
      %s106 = sshll.u32 %s11, 4
      %s107 = int_to_ptr.hbm [resolvable:$true] %s106
      %s108 = sshll.u32 [#allocation11], 4
      %s109 = int_to_ptr.vmem [resolvable:$true] %s108
      %114 = dma.hbm_to_vmem [thread:$0]  %s107, 256, %s109, [#allocation12], 64, 64, 4
    $region49: #{tpu_custom_call.1} parent=1 // pred_fallthru
      _
    // Predicated region
    $region50: #{tpu_custom_call.1} parent=1 // pred_check
      _
    $region51: #{tpu_custom_call.1} parent=1 // pred_check_branch
      %116 = sbr.rel (0) target = $region53
    $region52: #{tpu_custom_call.1} parent=1 // pred_region
      %118 = dma.done [#allocation3], 128
    $region53: #{tpu_custom_call.1} parent=1 // pred_fallthru
      _
    // Predicated region
    $region54: #{tpu_custom_call.1} parent=1 // pred_check
      _
    $region55: #{tpu_custom_call.1} parent=1 // pred_check_branch
      %120 = sbr.rel (0) target = $region57
    $region56: #{tpu_custom_call.1} parent=1 // pred_region
      %122 = dma.done [#allocation6], 256
    $region57: #{tpu_custom_call.1} parent=1 // pred_fallthru
      _
    // Predicated region
    $region58: #{tpu_custom_call.1} parent=1 // pred_check
      _
    $region59: #{tpu_custom_call.1} parent=1 // pred_check_branch
      %124 = sbr.rel (0) target = $region61
    $region60: #{tpu_custom_call.1} parent=1 // pred_region
      %126 = dma.done [#allocation6], 256
    $region61: #{tpu_custom_call.1} parent=1 // pred_fallthru
      _
    // Predicated region
    $region62: #{tpu_custom_call.1} parent=1 // pred_check
      _
    $region63: #{tpu_custom_call.1} parent=1 // pred_check_branch
      %128 = sbr.rel (0) target = $region65
    $region64: #{tpu_custom_call.1} parent=1 // pred_region
      %130 = dma.done [#allocation9], 256
    $region65: #{tpu_custom_call.1} parent=1 // pred_fallthru
      _
    // Predicated region
    $region66: #{tpu_custom_call.1} parent=1 // pred_check
      _
    $region67: #{tpu_custom_call.1} parent=1 // pred_check_branch
      %132 = sbr.rel (0) target = $region69
    $region68: #{tpu_custom_call.1} parent=1 // pred_region
      %134 = dma.done [#allocation9], 256
    $region69: #{tpu_custom_call.1} parent=1 // pred_fallthru
      _
    // Predicated region
    $region70: #{tpu_custom_call.1} parent=1 // pred_check
      _
    $region71: #{tpu_custom_call.1} parent=1 // pred_check_branch
      %136 = sbr.rel (0) target = $region73
    $region72: #{tpu_custom_call.1} parent=1 // pred_region
      %138 = dma.done [#allocation12], 256
    $region73: #{tpu_custom_call.1} parent=1 // pred_fallthru
      _
    %v140 = vld [vmem:[%s0] sm:$0xff]
    %v141 = vld [vmem:[%s0 + $0x8] sm:$0xff]
    %v142 = vlaneseq
    %v143 = vand.u32 %v142, 127
    %144 = vset.pattern.permute.xlu0 0
    %145 = vperm.xlu0 %144, %v140
    %v146 = vpop.permute.xlu0 %145
    %147 = vset.pattern.permute.xlu0 0
    %148 = vperm.xlu0 %147, %v141
    %v149 = vpop.permute.xlu0 %148
    %vm150 = vcmp.eq.s32.totalorder %v146, %v143
    %vm151 = vcmp.eq.s32.totalorder %v149, %v143
    %v152 = vsel %vm150, 1, 0
    %v153 = vsel %vm151, 1, 0
    %v154 = vcvt.s32.f32 %v152
    %v155 = vcvt.s32.f32 %v153
    %v156 = vpack.c.bf16 %v154, %v154
    %v157 = vpack.c.bf16 %v155, %v155
    %158 = vset.pattern.permute.xlu0 1
    %159 = vperm.xlu0 %158, %v140
    %v160 = vpop.permute.xlu0 %159
    %161 = vset.pattern.permute.xlu0 1
    %162 = vperm.xlu0 %161, %v141
    %v163 = vpop.permute.xlu0 %162
    %vm164 = vcmp.eq.s32.totalorder %v160, %v143
    %vm165 = vcmp.eq.s32.totalorder %v163, %v143
    %v166 = vsel %vm164, 1, 0
    %v167 = vsel %vm165, 1, 0
    %v168 = vcvt.s32.f32 %v166
    %v169 = vcvt.s32.f32 %v167
    %v170 = vpack.c.bf16 %v168, %v168
    %v171 = vpack.c.bf16 %v169, %v169
    %v172 = vunpack.c.l.bf16 %v156
    %v173 = vunpack.c.l.bf16 %v157
    %v174 = vunpack.c.l.bf16 %v170
    %v175 = vunpack.c.l.bf16 %v171
    %v176 = vadd.f32 %v172, %v174
    %v177 = vadd.f32 %v173, %v175
    %v178 = vpack.c.bf16 %v177, %v176
    %v179 = vmax.f32 %v172, %v174
    %v180 = vmax.f32 %v173, %v175
    %v181 = vpack.c.bf16 %v179, %v179
    %v182 = vpack.c.bf16 %v180, %v180
    %vm183 = vcmask 60416
    %184 = vst.msk [vmem:[%s15] sm:$0xf] %vm183, %v181
    %185 = vst.msk [vmem:[%s15 + $0x4] sm:$0xf] %vm183, %v182
    %v186 = vld [vmem:[#allocation2] sm:$0xff]
    %v187 = vpack.c.bf16 %v186, %v186
    %v188 = vld [vmem:[%s1] sm:$0xff]
    %v189 = vld [vmem:[%s1 + $0x8] sm:$0xff]
    %v190 = vpack.c.bf16 %v189, %v188
    %v191 = vld [vmem:[#allocation5] sm:$0xf]
    %v192 = vld [vmem:[#allocation5 + $0x4] sm:$0xf]
    %v193 = vld [vmem:[#allocation5 + $0x8] sm:$0xf]
    %v194 = vld [vmem:[#allocation5 + $0xc] sm:$0xf]
    %v195 = vld [vmem:[%s4] sm:$0x1]
    %v197 = vperm.slane %v195, 0
    %v203 = vunpack.c.l.b16 %v191
    %v204 = vunpack.c.l.b16 %v192
    %v205 = vunpack.c.l.b16 %v193
    %v206 = vunpack.c.l.b16 %v194
    %v207 = vpack.c.b16 %v204, %v203
    %v208 = vpack.c.b16 %v206, %v205
    %vm211 = vcmask 261120
    %v213 = vsel %vm211, %v187, 0
    %215 = vmatpush.bf16.msra.mxu0 0
    %216 = vmatpush.bf16.msra.mxu0 0
    %217 = vmatpush.bf16.msra.mxu0 0
    %218 = vmatpush.bf16.msra.mxu0 0
    %219 = vmatpush.bf16.msra.mxu0 0
    %220 = vmatpush.bf16.msra.mxu0 0
    %221 = vmatpush.bf16.msra.mxu0 %v208
    %222 = vmatpush.bf16.msra.mxu0 %v207
    %223 = vmatmul.bf16.gmra.mxu0 %v213
    %v224 = vpop.f32.mrf.mxu0
    %v225 = vadd.f32 %v197, %v224
    %v226 = vpop.f32.mrf.mxu0
    %227 = vdwg.mxu0
    %v228 = vld [vmem:[#allocation7] sm:$0xf]
    %v229 = vld [vmem:[#allocation7 + $0x4] sm:$0xf]
    %v230 = vld [vmem:[#allocation7 + $0x8] sm:$0xf]
    %v231 = vld [vmem:[#allocation7 + $0xc] sm:$0xf]
    %v232 = vld [vmem:[%s6] sm:$0x1]
    %v234 = vperm.slane %v232, 0
    %v240 = vunpack.c.l.b16 %v228
    %v241 = vunpack.c.l.b16 %v229
    %v242 = vunpack.c.l.b16 %v230
    %v243 = vunpack.c.l.b16 %v231
    %v244 = vpack.c.b16 %v241, %v240
    %v245 = vpack.c.b16 %v243, %v242
    %248 = vmatpush.bf16.msra.mxu0 0
    %249 = vmatpush.bf16.msra.mxu0 0
    %250 = vmatpush.bf16.msra.mxu0 0
    %251 = vmatpush.bf16.msra.mxu0 0
    %252 = vmatpush.bf16.msra.mxu0 0
    %253 = vmatpush.bf16.msra.mxu0 0
    %254 = vmatpush.bf16.msra.mxu0 %v245
    %255 = vmatpush.bf16.msra.mxu0 %v244
    %256 = vmatmul.bf16.gmra.mxu0 %v213
    %v257 = vpop.f32.mrf.mxu0
    %v258 = vadd.f32 %v234, %v257
    %v259 = vpop.f32.mrf.mxu0
    %260 = vdwg.mxu0
    %v261 = vld [vmem:[#allocation8] sm:$0xf]
    %v262 = vld [vmem:[#allocation8 + $0x4] sm:$0xf]
    %v263 = vld [vmem:[#allocation8 + $0x8] sm:$0xf]
    %v264 = vld [vmem:[#allocation8 + $0xc] sm:$0xf]
    %v265 = vld [vmem:[%s8] sm:$0x1]
    %v267 = vperm.slane %v265, 0
    %v273 = vunpack.c.l.b16 %v261
    %v274 = vunpack.c.l.b16 %v262
    %v275 = vunpack.c.l.b16 %v263
    %v276 = vunpack.c.l.b16 %v264
    %v277 = vpack.c.b16 %v274, %v273
    %v278 = vpack.c.b16 %v276, %v275
    %v282 = vsel %vm211, %v190, 0
    %284 = vmatpush.bf16.msra.mxu0 0
    %285 = vmatpush.bf16.msra.mxu0 0
    %286 = vmatpush.bf16.msra.mxu0 0
    %287 = vmatpush.bf16.msra.mxu0 0
    %288 = vmatpush.bf16.msra.mxu0 0
    %289 = vmatpush.bf16.msra.mxu0 0
    %290 = vmatpush.bf16.msra.mxu0 %v278
    %291 = vmatpush.bf16.msra.mxu0 %v277
    %292 = vmatmul.bf16.gmra.mxu0 %v282
    %v293 = vpop.f32.mrf.mxu0
    %v294 = vadd.f32 %v267, %v293
    %v295 = vpop.f32.mrf.mxu0
    %v296 = vadd.f32 %v267, %v295
    %297 = vdwg.mxu0
    %v298 = vpack.c.bf16 %v225, %v225
    %vm299 = vcmask 64512
    %v301 = vsel %vm299, %v178, 0
    %vm303 = vcmask 1043456
    %v305 = vsel %vm303, %v298, 0
    %307 = vmatpush.bf16.msra.mxu0 0
    %308 = vmatpush.bf16.msra.mxu0 0
    %309 = vmatpush.bf16.msra.mxu0 0
    %310 = vmatpush.bf16.msra.mxu0 0
    %311 = vmatpush.bf16.msra.mxu0 0
    %312 = vmatpush.bf16.msra.mxu0 0
    %313 = vmatpush.bf16.msra.mxu0 0
    %314 = vmatpush.bf16.msra.mxu0 %v305
    %315 = vmatmul.bf16.gmra.mxu0 %v301
    %v316 = vpop.f32.mrf.mxu0
    %v317 = vadd.f32 0.0, %v316
    %v318 = vpop.f32.mrf.mxu0
    %v319 = vadd.f32 0.0, %v318
    %320 = vdwg.mxu0
    %v321 = vadd.f32 %v294, %v317
    %v322 = vadd.f32 %v296, %v319
    %v323 = vld [vmem:[#allocation10] sm:$0xf]
    %v324 = vld [vmem:[#allocation10 + $0x4] sm:$0xf]
    %v325 = vld [vmem:[#allocation10 + $0x8] sm:$0xf]
    %v326 = vld [vmem:[#allocation10 + $0xc] sm:$0xf]
    %v327 = vld [vmem:[%s10] sm:$0x1]
    %v329 = vperm.slane %v327, 0
    %v335 = vunpack.c.l.b16 %v323
    %v336 = vunpack.c.l.b16 %v324
    %v337 = vunpack.c.l.b16 %v325
    %v338 = vunpack.c.l.b16 %v326
    %v339 = vpack.c.b16 %v336, %v335
    %v340 = vpack.c.b16 %v338, %v337
    %343 = vmatpush.bf16.msra.mxu0 0
    %344 = vmatpush.bf16.msra.mxu0 0
    %345 = vmatpush.bf16.msra.mxu0 0
    %346 = vmatpush.bf16.msra.mxu0 0
    %347 = vmatpush.bf16.msra.mxu0 0
    %348 = vmatpush.bf16.msra.mxu0 0
    %349 = vmatpush.bf16.msra.mxu0 %v340
    %350 = vmatpush.bf16.msra.mxu0 %v339
    %351 = vmatmul.bf16.gmra.mxu0 %v282
    %v352 = vpop.f32.mrf.mxu0
    %v353 = vadd.f32 %v329, %v352
    %v354 = vpop.f32.mrf.mxu0
    %v355 = vadd.f32 %v329, %v354
    %356 = vdwg.mxu0
    %v357 = vpack.c.bf16 %v258, %v258
    %v359 = vsel %vm303, %v357, 0
    %361 = vmatpush.bf16.msra.mxu0 0
    %362 = vmatpush.bf16.msra.mxu0 0
    %363 = vmatpush.bf16.msra.mxu0 0
    %364 = vmatpush.bf16.msra.mxu0 0
    %365 = vmatpush.bf16.msra.mxu0 0
    %366 = vmatpush.bf16.msra.mxu0 0
    %367 = vmatpush.bf16.msra.mxu0 0
    %368 = vmatpush.bf16.msra.mxu0 %v359
    %369 = vmatmul.bf16.gmra.mxu0 %v301
    %v370 = vpop.f32.mrf.mxu0
    %v371 = vadd.f32 0.0, %v370
    %v372 = vpop.f32.mrf.mxu0
    %v373 = vadd.f32 0.0, %v372
    %374 = vdwg.mxu0
    %v375 = vadd.f32 %v353, %v371
    %v376 = vadd.f32 %v355, %v373
    %v377 = vpack.c.bf16 %v321, %v321
    %v378 = vpack.c.bf16 %v322, %v322
    %vm379 = vcmask 257024
    %380 = vst.msk [vmem:[#allocation13] sm:$0xf] %vm379, %v377
    %381 = vst.msk [vmem:[#allocation13 + $0x4] sm:$0xf] %vm379, %v378
    %v382 = vpack.c.bf16 %v375, %v375
    %v383 = vpack.c.bf16 %v376, %v376
    %384 = vst.msk [vmem:[#allocation14] sm:$0xf] %vm379, %v382
    %385 = vst.msk [vmem:[#allocation14 + $0x4] sm:$0xf] %vm379, %v383
    %v386 = vld [vmem:[#allocation11] sm:$0xf]
    %v389 = vunpack.c.l.b16 %v382
    %v390 = vunpack.c.l.b16 %v383
    %v391 = vpack.c.b16 %v390, %v389
    %392 = vrot.lane.b32.xlu0 %v391, 96
    %v393 = vpop.permute.xlu0 %392
    %v395 = vsel %vm299, %v393, 0
    %v398 = vsel %vm303, %v386, 0
    %400 = vmatpush.bf16.msra.mxu0 0
    %401 = vmatpush.bf16.msra.mxu0 0
    %402 = vmatpush.bf16.msra.mxu0 0
    %403 = vmatpush.bf16.msra.mxu0 0
    %404 = vmatpush.bf16.msra.mxu0 0
    %405 = vmatpush.bf16.msra.mxu0 0
    %406 = vmatpush.bf16.msra.mxu0 0
    %407 = vmatpush.bf16.msra.mxu0 %v398
    %408 = vmatmul.bf16.gmra.mxu0 %v395
    %v409 = vpop.f32.mrf.mxu0
    %v410 = vadd.f32 0.0, %v409
    %v411 = vpop.f32.mrf.mxu0
    %v412 = vadd.f32 0.0, %v411
    %413 = vdwg.mxu0
    %v414 = vpack.c.bf16 %v410, %v410
    %v415 = vpack.c.bf16 %v412, %v412
    %416 = vst.msk [vmem:[#allocation16] sm:$0xf] %vm379, %v414
    %417 = vst.msk [vmem:[#allocation16 + $0x4] sm:$0xf] %vm379, %v415
    %s418 = scalar_lea.vmem [#allocation11], 4
    %v419 = vld [vmem:[%s418] sm:$0xf]
    %420 = vrot.lane.b32.xlu0 %v391, 88
    %v421 = vpop.permute.xlu0 %420
    %v423 = vsel %vm299, %v421, 0
    %v426 = vsel %vm303, %v419, 0
    %428 = vmatpush.bf16.msra.mxu0 0
    %429 = vmatpush.bf16.msra.mxu0 0
    %430 = vmatpush.bf16.msra.mxu0 0
    %431 = vmatpush.bf16.msra.mxu0 0
    %432 = vmatpush.bf16.msra.mxu0 0
    %433 = vmatpush.bf16.msra.mxu0 0
    %434 = vmatpush.bf16.msra.mxu0 0
    %435 = vmatpush.bf16.msra.mxu0 %v426
    %436 = vmatmul.bf16.gmra.mxu0 %v423
    %v437 = vpop.f32.mrf.mxu0
    %v438 = vadd.f32 0.0, %v437
    %v439 = vpop.f32.mrf.mxu0
    %v440 = vadd.f32 0.0, %v439
    %441 = vdwg.mxu0
    %v442 = vpack.c.bf16 %v438, %v438
    %v443 = vpack.c.bf16 %v440, %v440
    %s444 = scalar_lea.vmem [#allocation16], 8
    %445 = vst.msk [vmem:[%s444] sm:$0xf] %vm379, %v442
    %446 = vst.msk [vmem:[%s444 + $0x4] sm:$0xf] %vm379, %v443
    %s447 = scalar_lea.vmem [#allocation11], 8
    %v448 = vld [vmem:[%s447] sm:$0xf]
    %449 = vrot.lane.b32.xlu0 %v391, 80
    %v450 = vpop.permute.xlu0 %449
    %v452 = vsel %vm299, %v450, 0
    %v455 = vsel %vm303, %v448, 0
    %457 = vmatpush.bf16.msra.mxu0 0
    %458 = vmatpush.bf16.msra.mxu0 0
    %459 = vmatpush.bf16.msra.mxu0 0
    %460 = vmatpush.bf16.msra.mxu0 0
    %461 = vmatpush.bf16.msra.mxu0 0
    %462 = vmatpush.bf16.msra.mxu0 0
    %463 = vmatpush.bf16.msra.mxu0 0
    %464 = vmatpush.bf16.msra.mxu0 %v455
    %465 = vmatmul.bf16.gmra.mxu0 %v452
    %v466 = vpop.f32.mrf.mxu0
    %v467 = vadd.f32 0.0, %v466
    %v468 = vpop.f32.mrf.mxu0
    %v469 = vadd.f32 0.0, %v468
    %470 = vdwg.mxu0
    %v471 = vpack.c.bf16 %v467, %v467
    %v472 = vpack.c.bf16 %v469, %v469
    %s473 = scalar_lea.vmem [#allocation16], 16
    %474 = vst.msk [vmem:[%s473] sm:$0xf] %vm379, %v471
    %475 = vst.msk [vmem:[%s473 + $0x4] sm:$0xf] %vm379, %v472
    %s476 = scalar_lea.vmem [#allocation11], 12
    %v477 = vld [vmem:[%s476] sm:$0xf]
    %478 = vrot.lane.b32.xlu0 %v391, 72
    %v479 = vpop.permute.xlu0 %478
    %v481 = vsel %vm299, %v479, 0
    %v484 = vsel %vm303, %v477, 0
    %486 = vmatpush.bf16.msra.mxu0 0
    %487 = vmatpush.bf16.msra.mxu0 0
    %488 = vmatpush.bf16.msra.mxu0 0
    %489 = vmatpush.bf16.msra.mxu0 0
    %490 = vmatpush.bf16.msra.mxu0 0
    %491 = vmatpush.bf16.msra.mxu0 0
    %492 = vmatpush.bf16.msra.mxu0 0
    %493 = vmatpush.bf16.msra.mxu0 %v484
    %494 = vmatmul.bf16.gmra.mxu0 %v481
    %v495 = vpop.f32.mrf.mxu0
    %v496 = vadd.f32 0.0, %v495
    %v497 = vpop.f32.mrf.mxu0
    %v498 = vadd.f32 0.0, %v497
    %499 = vdwg.mxu0
    %v500 = vpack.c.bf16 %v496, %v496
    %v501 = vpack.c.bf16 %v498, %v498
    %s502 = scalar_lea.vmem [#allocation16], 24
    %503 = vst.msk [vmem:[%s502] sm:$0xf] %vm379, %v500
    %504 = vst.msk [vmem:[%s502 + $0x4] sm:$0xf] %vm379, %v501
    // Predicated region
    $region74: #{tpu_custom_call.1} parent=1 // pred_check
      _
    $region75: #{tpu_custom_call.1} parent=1 // pred_check_branch
      %506 = sbr.rel (0) target = $region77
    $region76: #{tpu_custom_call.1} parent=1 // pred_region
      %508 = vsyncadd [#allocation4], 0
      %s509 = sshll.u32 [#allocation13], 4
      %s510 = int_to_ptr.vmem [resolvable:$true] %s509
      %s511 = sshll.u32 %s12, 4
      %s512 = int_to_ptr.hbm [resolvable:$true] %s511
      %517 = dma.vmem_to_hbm [thread:$0]  %s510, 128, %s512, [#allocation4], 64, 64, 4
    $region77: #{tpu_custom_call.1} parent=1 // pred_fallthru
      _
    // Predicated region
    $region78: #{tpu_custom_call.1} parent=1 // pred_check
      _
    $region79: #{tpu_custom_call.1} parent=1 // pred_check_branch
      %519 = sbr.rel (0) target = $region81
    $region80: #{tpu_custom_call.1} parent=1 // pred_region
      %521 = vsyncadd [#allocation15], 0
      %s522 = sshll.u32 [#allocation14], 4
      %s523 = int_to_ptr.vmem [resolvable:$true] %s522
      %s524 = sshll.u32 %s13, 4
      %s525 = int_to_ptr.hbm [resolvable:$true] %s524
      %530 = dma.vmem_to_hbm [thread:$0]  %s523, 128, %s525, [#allocation15], 64, 64, 4
    $region81: #{tpu_custom_call.1} parent=1 // pred_fallthru
      _
    // Predicated region
    $region82: #{tpu_custom_call.1} parent=1 // pred_check
      _
    $region83: #{tpu_custom_call.1} parent=1 // pred_check_branch
      %532 = sbr.rel (0) target = $region85
    $region84: #{tpu_custom_call.1} parent=1 // pred_region
      %534 = vsyncadd [#allocation15], 0
      %s535 = sshll.u32 [#allocation16], 4
      %s536 = int_to_ptr.vmem [resolvable:$true] %s535
      %s537 = sshll.u32 %s14, 4
      %s538 = int_to_ptr.hbm [resolvable:$true] %s537
      %543 = dma.vmem_to_hbm [thread:$0]  %s536, 512, %s538, [#allocation15], 64, 64, 4
    $region85: #{tpu_custom_call.1} parent=1 // pred_fallthru
      _
    // Predicated region
    $region86: #{tpu_custom_call.1} parent=1 // pred_check
      _
    $region87: #{tpu_custom_call.1} parent=1 // pred_check_branch
      %545 = sbr.rel (0) target = $region89
    $region88: #{tpu_custom_call.1} parent=1 // pred_region
      _
    $region89: #{tpu_custom_call.1} parent=1 // pred_fallthru
      _
    // Predicated region
    $region90: #{tpu_custom_call.1} parent=1 // pred_check
      _
    $region91: #{tpu_custom_call.1} parent=1 // pred_check_branch
      %547 = sbr.rel (0) target = $region93
    $region92: #{tpu_custom_call.1} parent=1 // pred_region
      %549 = dma.done [#allocation4], 128
    $region93: #{tpu_custom_call.1} parent=1 // pred_fallthru
      _
    // Predicated region
    $region94: #{tpu_custom_call.1} parent=1 // pred_check
      _
    $region95: #{tpu_custom_call.1} parent=1 // pred_check_branch
      %551 = sbr.rel (0) target = $region97
    $region96: #{tpu_custom_call.1} parent=1 // pred_region
      %553 = dma.done [#allocation15], 128
    $region97: #{tpu_custom_call.1} parent=1 // pred_fallthru
      _
    // Predicated region
    $region98: #{tpu_custom_call.1} parent=1 // pred_check
      _
    $region99: #{tpu_custom_call.1} parent=1 // pred_check_branch
      %555 = sbr.rel (0) target = $region101
    $region100: #{tpu_custom_call.1} parent=1 // pred_region
      %557 = dma.done [#allocation15], 512
    $region101: #{tpu_custom_call.1} parent=1 // pred_fallthru
      _
    // Predicated region
    $region102: #{tpu_custom_call.1} parent=1 // pred_check
      _
    $region103: #{tpu_custom_call.1} parent=1 // pred_check_branch
      %559 = sbr.rel (0) target = $region105
    $region104: #{tpu_custom_call.1} parent=1 // pred_region
      _
    $region105: #{tpu_custom_call.1} parent=1 // pred_fallthru
      _
    %560 = vsyncpa [#allocation3], 1
    %561 = vsyncpa [#allocation6], 1
    %562 = vsyncpa [#allocation9], 1
    %563 = vsyncpa [#allocation12], 1
    %564 = vsyncpa [#allocation4], 1
    %565 = vsyncpa [#allocation15], 1

</llo_original>
